<compile_context>
chip_gen: v6e
topology: v6e:2x2x1
jax: 0.10.0
libtpu: 0.0.40
codegen_flags: <defaults>
</compile_context>

<pallas_src>
import functools

import jax
import jax.numpy as jnp
from jax.experimental import pallas as pl
from jax.experimental.pallas import tpu as pltpu

_LANES = 128
_SUBLANES = 8


def _round_up(x, m):
    return ((x + m - 1) // m) * m


def _linear_kernel(x_ref, w_ref, b_ref, o_ref, *, num_classes, padded_classes):
    # x_ref: [TM, F]  caller dtype (e.g. f32); cast to the MXU input dtype here so
    #        the wrapper never materializes a bf16 copy of x in HBM.
    # w_ref: [F, Cpad] bf16, resident across the grid.
    # b_ref: [1, Cpad] f32, resident.
    # o_ref: [TM, num_classes] caller output dtype; class-pad slice + final cast
    #        are folded into this store (no post-call XLA slice/cast pass).
    x = x_ref[...].astype(w_ref.dtype)
    acc = jnp.dot(x, w_ref[...], preferred_element_type=jnp.float32)
    acc = acc + b_ref[...]
    if num_classes != padded_classes:
        acc = acc[:, :num_classes]
    o_ref[...] = acc.astype(o_ref.dtype)


def prepare_linear_params(weight, bias, *, compute_dtype=jnp.bfloat16):
    """One-time (parameter-load-time) prep.

    Takes PyTorch-layout weight [C, F] and bias [C]; returns kernel-ready weight
    [F, Cpad] (transposed, class dim zero-padded to 128 lanes, cast to the MXU
    input dtype) and bias [1, Cpad] (f32). Pass compute_dtype=jnp.float32 if
    closer-to-f32 parity with torch.nn.Linear is required.
    """
    C, F = weight.shape
    Cpad = _round_up(C, _LANES)
    w_pad = jnp.zeros((F, Cpad), dtype=compute_dtype)
    w_pad = w_pad.at[:, :C].set(weight.T.astype(compute_dtype))
    b_pad = jnp.zeros((1, Cpad), dtype=jnp.float32)
    b_pad = b_pad.at[:, :C].set(bias.astype(jnp.float32)[None, :])
    return w_pad, b_pad, C


def _select_block_m(B, F, Cpad, *, x_itemsize, w_itemsize, out_itemsize,
                    block_m_cap=1024, vmem_budget=24 * 1024 * 1024):
    """Largest TM (multiple of 8) fitting the VMEM budget, grid >= 2 if B allows."""
    tm = min(block_m_cap, _round_up(B, _SUBLANES))
    if B >= 2 * _SUBLANES:
        # Keep at least 2 grid steps so v7x's second TensorCore gets work
        # (dimension_semantics=("parallel",)); no effect on v5e/v6e.
        tm = min(tm, _round_up(-(-B // 2), _SUBLANES))

    # Pallas allocates 2 buffers per in_spec by default, including the resident
    # weight/bias whose index_map is constant -> count them double-buffered.
    resident = 2 * (F * Cpad * w_itemsize + Cpad * 4)

    def vmem_needed(t):
        return (resident
                + 2 * t * F * x_itemsize          # double-buffered x tiles
                + 2 * t * Cpad * out_itemsize     # double-buffered out tiles (conservative width)
                + t * Cpad * 4)                   # f32 accumulator headroom

    while tm > _SUBLANES and vmem_needed(tm) > vmem_budget:
        tm -= _SUBLANES
    return tm, vmem_needed(tm)


def linear_classifier(features, w_pad, b_pad, num_classes, *, block_m=1024,
                      out_dtype=None):
    """features: [B, F]; w_pad: [F, Cpad]; b_pad: [1, Cpad] -> [B, num_classes].

    Matches torch.nn.Linear(feature_dim, num_classes).forward (bf16 MXU inputs,
    f32 accumulation/epilogue). Output dtype defaults to features.dtype; pass
    out_dtype=jnp.bfloat16 for bf16 logits (halves the output HBM stream).
    """
    B, F = features.shape
    Fw, Cpad = w_pad.shape
    assert Fw == F and Cpad % _LANES == 0 and num_classes <= Cpad
    out_dtype = features.dtype if out_dtype is None else jnp.dtype(out_dtype)

    tm, vmem_needed = _select_block_m(
        B, F, Cpad,
        x_itemsize=features.dtype.itemsize,
        w_itemsize=w_pad.dtype.itemsize,
        out_itemsize=jnp.dtype(out_dtype).itemsize,
        block_m_cap=block_m)

    # Ragged last tile instead of round-up padding: no wasted full-TM DMA/compute
    # for sliced-off rows and no jnp.pad copy of x in HBM.
    grid = (pl.cdiv(B, tm),)

    flops = 2 * B * F * Cpad
    bytes_accessed = (features.size * features.dtype.itemsize
                      + w_pad.size * w_pad.dtype.itemsize
                      + b_pad.size * b_pad.dtype.itemsize
                      + B * num_classes * jnp.dtype(out_dtype).itemsize)
    cost = pl.CostEstimate(flops=flops, transcendentals=0,
                           bytes_accessed=bytes_accessed)

    # Limit sized from the (double-buffer-aware) estimate; capped at 32 MiB so the
    # same sizing is valid against v7x's 64 MiB physical VMEM.
    vmem_limit = int(min(32 * 1024 * 1024, max(16 * 1024 * 1024, 2 * vmem_needed)))

    kernel = functools.partial(_linear_kernel, num_classes=num_classes,
                               padded_classes=Cpad)

    return pl.pallas_call(
        kernel,
        out_shape=jax.ShapeDtypeStruct((B, num_classes), out_dtype),
        grid_spec=pltpu.PrefetchScalarGridSpec(
            num_scalar_prefetch=0,
            grid=grid,
            in_specs=[
                pl.BlockSpec((tm, F), lambda i: (i, 0)),     # batch-tiled activations (caller dtype)
                pl.BlockSpec((F, Cpad), lambda i: (0, 0)),   # resident bf16 weight slab
                pl.BlockSpec((1, Cpad), lambda i: (0, 0)),   # resident f32 bias
            ],
            out_specs=pl.BlockSpec((tm, num_classes), lambda i: (i, 0)),
        ),
        compiler_params=pltpu.CompilerParams(
            dimension_semantics=("parallel",),   # megacore sharding on v7x
            vmem_limit_bytes=vmem_limit,
        ),
        cost_estimate=cost,
    )(features, w_pad, b_pad)


if __name__ == "__main__":
    # Small shapes consistent with LinearClassifier(feature_dim, num_classes=18).
    B = 2
    feature_dim = 32
    num_classes = 18

    key = jax.random.PRNGKey(0)
    k_x, k_w, k_b = jax.random.split(key, 3)

    # Deterministic synthetic parameters (PyTorch nn.Linear-like uniform init range).
    bound = 1.0 / (feature_dim ** 0.5)
    features = jax.random.normal(k_x, (B, feature_dim), dtype=jnp.float32)
    weight = jax.random.uniform(k_w, (num_classes, feature_dim),
                                minval=-bound, maxval=bound, dtype=jnp.float32)
    bias = jax.random.uniform(k_b, (num_classes,),
                              minval=-bound, maxval=bound, dtype=jnp.float32)

    # One-time parameter prep (transpose + lane-pad + bf16 cast), then the call.
    w_pad, b_pad, C = prepare_linear_params(weight, bias)
    out = linear_classifier(features, w_pad, b_pad, C)
    out = jax.block_until_ready(out)

    # bf16-faithful reference (same math as the kernel: bf16 MXU inputs, f32 acc).
    ref_bf16 = jnp.dot(features.astype(jnp.bfloat16), weight.T.astype(jnp.bfloat16),
                       preferred_element_type=jnp.float32) + bias
    # Full f32 reference (torch.nn.Linear semantics), looser tolerance for bf16 inputs.
    ref_f32 = features @ weight.T + bias

    assert out.shape == (B, num_classes)
    assert out.dtype == features.dtype
    assert jnp.allclose(out, ref_bf16, atol=1e-3, rtol=1e-3)
    assert jnp.allclose(out, ref_f32, atol=5e-2, rtol=5e-2)

    print("KERNEL_OK")
</pallas_src>

<mosaic_0001>
module attributes {stable_mosaic.version = 11 : i64} {
  func.func @_linear_kernel(%arg0: i32, %arg1: memref<8x32xf32, #tpu.memory_space<vmem>>, %arg2: memref<32x128xbf16, #tpu.memory_space<vmem>>, %arg3: memref<1x128xf32, #tpu.memory_space<vmem>>, %arg4: memref<8x18xf32, #tpu.memory_space<vmem>>) attributes {dimension_semantics = [#tpu.dimension_semantics<parallel>], iteration_bounds = array<i64: 1>, scalar_prefetch = 0 : i64, scratch_operands = 0 : i64, tpu.core_type = #tpu.core_type<tc>, window_params = [{transform_indices = @transform_0, window_bounds = array<i64: 8, 32>}, {pipeline_mode = #tpu.pipeline_mode<synchronous>, transform_indices = @transform_1, window_bounds = array<i64: 32, 128>}, {pipeline_mode = #tpu.pipeline_mode<synchronous>, transform_indices = @transform_2, window_bounds = array<i64: 1, 128>}, {transform_indices = @transform_3, window_bounds = array<i64: 8, 18>}]} {
    %c0 = arith.constant 0 : index
    %c0_0 = arith.constant 0 : index
    %0 = vector.load %arg1[%c0, %c0_0] : memref<8x32xf32, #tpu.memory_space<vmem>>, vector<8x32xf32>
    %1 = arith.truncf %0 : vector<8x32xf32> to vector<8x32xbf16>
    %c0_1 = arith.constant 0 : index
    %c0_2 = arith.constant 0 : index
    %2 = vector.load %arg2[%c0_1, %c0_2] : memref<32x128xbf16, #tpu.memory_space<vmem>>, vector<32x128xbf16>
    %cst = arith.constant dense<0.000000e+00> : vector<8x128xf32>
    %3 = tpu.matmul %1, %2, %cst {dimension_numbers = #tpu.dot_dimension_numbers<[1], [0], [0], [1], [0, 0, 1, 1], [], []>} : vector<8x32xbf16>, vector<32x128xbf16>, vector<8x128xf32> -> vector<8x128xf32>
    %c0_3 = arith.constant 0 : index
    %c0_4 = arith.constant 0 : index
    %4 = vector.load %arg3[%c0_3, %c0_4] : memref<1x128xf32, #tpu.memory_space<vmem>>, vector<1x128xf32>
    %5 = vector.broadcast %4 : vector<1x128xf32> to vector<8x128xf32>
    %6 = arith.addf %3, %5 : vector<8x128xf32>
    %7 = vector.extract_strided_slice %6 {offsets = [0, 0], sizes = [8, 18], strides = [1, 1]} : vector<8x128xf32> to vector<8x18xf32>
    %c0_5 = arith.constant 0 : index
    %c0_6 = arith.constant 0 : index
    %8 = vector.load %arg4[%c0_5, %c0_6] : memref<8x18xf32, #tpu.memory_space<vmem>>, vector<8x18xf32>
    tpu.vector_store %arg4[%c0_5, %c0_6], %7 {strides = array<i32>} : memref<8x18xf32, #tpu.memory_space<vmem>>, vector<8x18xf32>,
    return
  }
  func.func @transform_0(%arg0: i32) -> (i32, i32) {
    %c0_i32 = arith.constant 0 : i32
    %c0_i32_0 = arith.constant 0 : i32
    return %arg0, %c0_i32 : i32, i32
  }
  func.func @transform_1(%arg0: i32) -> (i32, i32) {
    %c0_i32 = arith.constant 0 : i32
    %c0_i32_0 = arith.constant 0 : i32
    %c0_i32_1 = arith.constant 0 : i32
    return %c0_i32, %c0_i32_0 : i32, i32
  }
  func.func @transform_2(%arg0: i32) -> (i32, i32) {
    %c0_i32 = arith.constant 0 : i32
    %c0_i32_0 = arith.constant 0 : i32
    %c0_i32_1 = arith.constant 0 : i32
    return %c0_i32, %c0_i32_0 : i32, i32
  }
  func.func @transform_3(%arg0: i32) -> (i32, i32) {
    %c0_i32 = arith.constant 0 : i32
    %c0_i32_0 = arith.constant 0 : i32
    return %arg0, %c0_i32 : i32, i32
  }
}

</mosaic_0001>

<llo_original>
// kernel: tpu_custom_call.1
$region0: #{tpu_custom_call.1}
  #allocation0 [shape = 'u32[]', space=smem, size = 0x4, offset = 0x4, fixed_abs, tag = 'smem constant byte address 0x4 - core index']
  #allocation1 [shape = 'u32[144,128]{1,0:T(1,128)}', space=vmem, size = 0x12000, scoped, tag = 'internal scratch']
  %s0 = inlined_call_operand.hbm [shape: f32[2,32], index: 0, kind: input, shape index: {}]
  %s1 = inlined_call_operand.hbm [shape: bf16[32,128], index: 1, kind: input, shape index: {}]
  %s2 = inlined_call_operand.vmem [shape: f32[1,128], index: 2, kind: input, shape index: {}]
  %s3 = inlined_call_operand.hbm [shape: f32[2,18], index: 3, kind: output, shape index: {}]
  %s4 = sld [smem:[#allocation0]]
  $region30: #{tpu_custom_call.1} parent=0
    _
  %s6 = ssub.s32 1, %s4
  %s7 = scalar_select 0, %s6, %s4
  $region1: #{tpu_custom_call.1} parent=0
    #allocation2 [shape = 'u8[4096]{0}', space=vmem, size = 0x1000, scoped, tag = 'input window, operand 0, single buffered']
    #allocation3 [shape = 's32[1]{0}', space=sflag, size = 0x4, scoped, tag = 'scoped memory for tpu_custom_call.1']
    #allocation4 [shape = 's32[1]{0}', space=sflag, size = 0x4, scoped, tag = 'scoped memory for tpu_custom_call.1']
    #allocation5 [shape = 'u8[8192]{0}', space=vmem, size = 0x2000, scoped, tag = 'input window, operand 1, single buffered']
    #allocation6 [shape = 's32[1]{0}', space=sflag, size = 0x4, scoped, tag = 'scoped memory for tpu_custom_call.1']
    #allocation7 [shape = 'u8[4096]{0}', space=vmem, size = 0x1000, scoped, tag = 'output window, operand 0, single buffered']
    %8 = vsyncpa [#allocation3], 0
    %9 = vsyncpa [#allocation6], 0
    %10 = vsyncpa [#allocation4], 0
    // Predicated region
    $region2: #{tpu_custom_call.1} parent=1 // pred_check
      _
    $region3: #{tpu_custom_call.1} parent=1 // pred_check_branch
      %12 = sbr.rel (0) target = $region5
    $region4: #{tpu_custom_call.1} parent=1 // pred_region
      %s14 = ssub.s32 128, 32
      %15 = vsyncadd [#allocation3], %s14
      %s16 = sshll.u32 [#allocation2], 4
      %s17 = int_to_ptr.vmem [resolvable:$true] %s16
      %22 = dma.hbm_to_vmem [thread:$0]  %s0, 32, %s17, [#allocation3], 32, 32, 2
    $region5: #{tpu_custom_call.1} parent=1 // pred_fallthru
      _
    // Predicated region
    $region6: #{tpu_custom_call.1} parent=1 // pred_check
      _
    $region7: #{tpu_custom_call.1} parent=1 // pred_check_branch
      %24 = sbr.rel (0) target = $region9
    $region8: #{tpu_custom_call.1} parent=1 // pred_region
      %s26 = ssub.s32 256, 256
      %27 = vsyncadd [#allocation6], %s26
      %s28 = sshll.u32 [#allocation5], 4
      %s29 = int_to_ptr.vmem [resolvable:$true] %s28
      %34 = dma.hbm_to_vmem [thread:$0]  %s1, 256, %s29, [#allocation6], 64, 64, 4
    $region9: #{tpu_custom_call.1} parent=1 // pred_fallthru
      _
    // Predicated region
    $region10: #{tpu_custom_call.1} parent=1 // pred_check
      _
    $region11: #{tpu_custom_call.1} parent=1 // pred_check_branch
      %36 = sbr.rel (0) target = $region13
    $region12: #{tpu_custom_call.1} parent=1 // pred_region
      _
    $region13: #{tpu_custom_call.1} parent=1 // pred_fallthru
      _
    // Predicated region
    $region14: #{tpu_custom_call.1} parent=1 // pred_check
      _
    $region15: #{tpu_custom_call.1} parent=1 // pred_check_branch
      %38 = sbr.rel (0) target = $region17
    $region16: #{tpu_custom_call.1} parent=1 // pred_region
      %39 = dma.done [#allocation3], 128
    $region17: #{tpu_custom_call.1} parent=1 // pred_fallthru
      _
    // Predicated region
    $region18: #{tpu_custom_call.1} parent=1 // pred_check
      _
    $region19: #{tpu_custom_call.1} parent=1 // pred_check_branch
      %41 = sbr.rel (0) target = $region21
    $region20: #{tpu_custom_call.1} parent=1 // pred_region
      %42 = dma.done [#allocation6], 256
    $region21: #{tpu_custom_call.1} parent=1 // pred_fallthru
      _
    %v44 = vld [vmem:[#allocation2] sm:$0xff]
    %v45 = vpack.c.bf16 %v44, %v44
    %v46 = vld [vmem:[#allocation5] sm:$0xf]
    %v47 = vld [vmem:[#allocation5 + $0x4] sm:$0xf]
    %v48 = vld [vmem:[#allocation5 + $0x8] sm:$0xf]
    %v49 = vld [vmem:[#allocation5 + $0xc] sm:$0xf]
    %v50 = vld [vmem:[%s2] sm:$0x1]
    %v52 = vlaneseq
    %v53 = vshrl.u32 %v52, 7
    %v54 = vsub.s32 0, %v53
    %v55 = vrot.slane %v50, %v54
    %v61 = vunpack.c.l.b16 %v46
    %v62 = vunpack.c.l.b16 %v47
    %v63 = vunpack.c.l.b16 %v48
    %v64 = vunpack.c.l.b16 %v49
    %v65 = vpack.c.b16 %v62, %v61
    %v66 = vpack.c.b16 %v64, %v63
    %vm69 = vcmask 261120
    %v71 = vsel %vm69, %v45, 0
    %73 = vmatprep.subr.bf16.mxu0 0
    %74 = vmatpush1.bf16.msra.mxu0 0
    %75 = vmatprep.subr.bf16.mxu0 0
    %76 = vmatpush1.bf16.msra.mxu0 0
    %77 = vmatprep.subr.bf16.mxu0 0
    %78 = vmatpush1.bf16.msra.mxu0 0
    %79 = vmatprep.subr.bf16.mxu0 0
    %80 = vmatpush1.bf16.msra.mxu0 0
    %81 = vmatprep.subr.bf16.mxu0 0
    %82 = vmatpush1.bf16.msra.mxu0 0
    %83 = vmatprep.subr.bf16.mxu0 0
    %84 = vmatpush1.bf16.msra.mxu0 0
    %85 = vmatprep.subr.bf16.mxu0 0
    %86 = vmatpush1.bf16.msra.mxu0 %v66
    %87 = vmatprep.subr.bf16.mxu0 0
    %88 = vmatpush1.bf16.msra.mxu0 %v65
    %89 = vmatprep.subr.bf16.mxu0 0
    %90 = vmatpush2.bf16.msra.mxu0 0
    %91 = vmatprep.subr.bf16.mxu0 0
    %92 = vmatpush2.bf16.msra.mxu0 0
    %93 = vmatprep.subr.bf16.mxu0 0
    %94 = vmatpush2.bf16.msra.mxu0 0
    %95 = vmatprep.subr.bf16.mxu0 0
    %96 = vmatpush2.bf16.msra.mxu0 0
    %97 = vmatprep.subr.bf16.mxu0 0
    %98 = vmatpush2.bf16.msra.mxu0 0
    %99 = vmatprep.subr.bf16.mxu0 0
    %100 = vmatpush2.bf16.msra.mxu0 0
    %101 = vmatprep.subr.bf16.mxu0 0
    %102 = vmatpush2.bf16.msra.mxu0 0
    %103 = vmatprep.subr.bf16.mxu0 0
    %104 = vmatpush2.bf16.msra.mxu0 0
    %105 = vmatprep.mubr.bf16.mxu0 0
    %106 = vmatmul.mubr.bf16.gmra.mxu0 %v71
    %v107 = vpop.f32.mrf.mxu0
    %v108 = vadd.f32 %v55, %v107
    %v109 = vpop.f32.mrf.mxu0
    %v110 = vpop.f32.mrf.mxu0
    %v111 = vpop.f32.mrf.mxu0
    %112 = vdwg.mxu0
    %vm113 = vcmask 146432
    %114 = vst.msk [vmem:[#allocation7] sm:$0xff] %vm113, %v108
    // Predicated region
    $region22: #{tpu_custom_call.1} parent=1 // pred_check
      _
    $region23: #{tpu_custom_call.1} parent=1 // pred_check_branch
      %116 = sbr.rel (0) target = $region25
    $region24: #{tpu_custom_call.1} parent=1 // pred_region
      %s118 = ssub.s32 128, 32
      %119 = vsyncadd [#allocation4], %s118
      %s120 = sshll.u32 [#allocation7], 4
      %s121 = int_to_ptr.vmem [resolvable:$true] %s120
      %126 = dma.vmem_to_hbm [thread:$0]  %s121, 32, %s3, [#allocation4], 32, 32, 2
    $region25: #{tpu_custom_call.1} parent=1 // pred_fallthru
      _
    // Predicated region
    $region26: #{tpu_custom_call.1} parent=1 // pred_check
      _
    $region27: #{tpu_custom_call.1} parent=1 // pred_check_branch
      %128 = sbr.rel (0) target = $region29
    $region28: #{tpu_custom_call.1} parent=1 // pred_region
      %129 = dma.done [#allocation4], 128
    $region29: #{tpu_custom_call.1} parent=1 // pred_fallthru
      _
    %130 = vsyncpa [#allocation3], 1
    %131 = vsyncpa [#allocation6], 1
    %132 = vsyncpa [#allocation4], 1

</llo_original>
